<compile_context>
chip_gen: v6e
topology: v6e:2x2x1
jax: 0.10.0
libtpu: 0.0.40
codegen_flags: <defaults>
</compile_context>

<pallas_src>
import functools

import jax
import jax.numpy as jnp
from jax.experimental import pallas as pl
from jax.experimental.pallas import tpu as pltpu

EPS = 1e-6


def _rmsnorm_kernel(x_ref, w_ref, o_ref, *, eps):
    # x_ref: (block_rows, dim), w_ref: (1, dim) [already out_dtype],
    # o_ref: (block_rows, dim)
    x = x_ref[...]
    x_f32 = x.astype(jnp.float32)
    # mean of squares over the last (lane) axis; keepdims for lane broadcast
    ms = jnp.mean(x_f32 * x_f32, axis=-1, keepdims=True)
    # match PyTorch: self._norm(x.float()).type_as(x)
    normed = (x_f32 * jax.lax.rsqrt(ms + eps)).astype(x.dtype)
    # match PyTorch: weight * normed  (promotes to out dtype)
    o_ref[...] = (w_ref[...] * normed).astype(o_ref.dtype)


def _hw_config():
    """Per-generation tuning: (target_total_tile_bytes, vmem_limit_bytes,
    use_core_parallel).  target_total_tile_bytes budgets the *combined*
    input+output tile bytes per grid step (each is double-buffered, so live
    VMEM ~= 2 * target)."""
    vmem_cap = None
    try:
        info = pltpu.get_tpu_info()
        vmem_cap = getattr(info, "vmem_capacity_bytes", None)
    except Exception:
        vmem_cap = None

    if vmem_cap is None:
        # Unknown chip: keep the previously-validated conservative config.
        return 4 << 20, 32 << 20, False
    if vmem_cap >= (100 << 20):
        # v4 / v5e / v6e: 128 MiB physical VMEM, single TensorCore per chip.
        # ~8 MiB in+out per step -> ~16 MiB live (double-buffered) << 64 MiB.
        return 8 << 20, 64 << 20, False
    if vmem_cap >= (60 << 20):
        # v7x-class: 64 MiB VMEM per TC, ~3.2 TB/s HBM, 2 TCs per chip.
        # Bigger tiles amortize the ~0.35 us/step overhead that now dominates;
        # ~12 MiB in+out per step -> ~24 MiB live, under a 48 MiB limit.
        return 12 << 20, 48 << 20, True
    # Small-VMEM / unrecognized parts: stay conservative, don't force a limit.
    return 2 << 20, None, False


def _pick_block_rows(rows: int, dim: int, in_itemsize: int, out_itemsize: int,
                     target_total_bytes: int):
    """Pick block_rows so the combined (input + output) tile is
    ~target_total_bytes, rounded to the sublane pack, capped at 8192 rows and
    at the (pack-rounded) total row count so tiny inputs stay tiny."""
    pack = max(8, 32 // in_itemsize)        # f32:8, bf16:16, int8/fp8:32
    bytes_per_row = dim * (in_itemsize + out_itemsize)
    br = max(pack, (target_total_bytes // bytes_per_row) // pack * pack)
    br = min(br, 8192)
    rows_padded = ((rows + pack - 1) // pack) * pack
    return pack, max(pack, min(br, rows_padded))


def rmsnorm(x: jax.Array, weight: jax.Array, *, eps: float = EPS,
            block_rows: int | None = None) -> jax.Array:
    """RMSNorm over the last axis of x. weight has shape (dim,)."""
    orig_shape = x.shape
    dim = orig_shape[-1]
    assert weight.shape == (dim,)

    # PyTorch semantics: weight(f32 param) * normed.type_as(x) promotes.
    out_dtype = jnp.promote_types(x.dtype, weight.dtype)

    x2d = x.reshape(-1, dim)
    rows = x2d.shape[0]
    in_itemsize = jnp.dtype(x.dtype).itemsize
    out_itemsize = jnp.dtype(out_dtype).itemsize

    target_total_bytes, vmem_limit, use_core_parallel = _hw_config()

    pack, auto_block_rows = _pick_block_rows(
        rows, dim, in_itemsize, out_itemsize, target_total_bytes)
    if block_rows is None:
        block_rows = auto_block_rows

    # On 2-TC chips make sure the grid has >= 2 steps so both cores get work.
    if use_core_parallel and rows > pack:
        half_rows = -(-rows // 2)                       # ceil(rows / 2)
        half_rows = ((half_rows + pack - 1) // pack) * pack
        block_rows = max(pack, min(block_rows, half_rows))

    # Weight cast hoisted out of the kernel; (1, dim) tile stays VMEM-resident
    # because its block index is constant (Pallas only re-DMAs when the block
    # index changes between steps).
    w2d = weight.astype(out_dtype).reshape(1, dim)

    grid = (pl.cdiv(rows, block_rows),)   # no pre-padding of the slab

    cost = pl.CostEstimate(
        flops=3 * rows * dim,
        transcendentals=rows,
        bytes_accessed=rows * dim * (in_itemsize + out_itemsize)
        + dim * out_itemsize,
    )

    kernel = functools.partial(_rmsnorm_kernel, eps=eps)

    # Row axis: CORE_PARALLEL on v7x-class chips (actually shards across the
    # 2 TensorCores, each with its own ~3.2 TB/s HBM path); plain "parallel"
    # elsewhere (single-TC chips), which also keeps megacore sharding legal.
    if use_core_parallel:
        dim_sem = (pltpu.CORE_PARALLEL,)
    else:
        dim_sem = ("parallel",)

    out = pl.pallas_call(
        kernel,
        out_shape=jax.ShapeDtypeStruct((rows, dim), out_dtype),
        grid_spec=pltpu.PrefetchScalarGridSpec(
            num_scalar_prefetch=0,
            grid=grid,
            in_specs=[
                pl.BlockSpec((block_rows, dim), lambda i: (i, 0)),
                pl.BlockSpec((1, dim), lambda i: (0, 0)),
            ],
            out_specs=pl.BlockSpec((block_rows, dim), lambda i: (i, 0)),
        ),
        compiler_params=pltpu.CompilerParams(
            dimension_semantics=dim_sem,
            vmem_limit_bytes=vmem_limit,
        ),
        cost_estimate=cost,
    )(x2d, w2d)

    return out.reshape(orig_shape)


def rmsnorm_ref(x, weight, eps=EPS):
    x_f32 = x.astype(jnp.float32)
    normed = x_f32 * jax.lax.rsqrt(
        jnp.mean(x_f32 * x_f32, axis=-1, keepdims=True) + eps
    )
    return weight * normed.astype(x.dtype)


if __name__ == "__main__":
    key = jax.random.PRNGKey(0)

    # Main test: lane-dense hidden (multiple of 128), f32, ones weight
    # (matches nn.Parameter(torch.ones(dim)) init).
    batch, seq, hidden = 2, 8, 128
    x = jax.random.normal(key, (batch, seq, hidden), dtype=jnp.float32)
    weight = jnp.ones((hidden,), dtype=jnp.float32)

    out = rmsnorm(x, weight)
    jax.block_until_ready(out)
    ref = rmsnorm_ref(x, weight)
    assert out.shape == x.shape and out.dtype == ref.dtype
    assert jnp.allclose(out, ref, atol=1e-5, rtol=1e-5)

    # Partial-block + narrow-dim path (rows not a multiple of the tile,
    # hidden < 128 -> full-extent last dim block; slow path, but correct).
    k2 = jax.random.PRNGKey(0)
    x2 = jax.random.normal(k2, (3, 5, 32), dtype=jnp.float32)
    w2 = jnp.ones((32,), dtype=jnp.float32)
    out2 = rmsnorm(x2, w2)
    jax.block_until_ready(out2)
    assert jnp.allclose(out2, rmsnorm_ref(x2, w2), atol=1e-5, rtol=1e-5)

    # Mixed precision path (bf16 activations, f32 weight -> f32 output,
    # matching PyTorch's promotion of weight * normed.type_as(x)).
    x3 = jax.random.normal(key, (batch, seq, hidden), dtype=jnp.bfloat16)
    out3 = rmsnorm(x3, weight)
    jax.block_until_ready(out3)
    ref3 = rmsnorm_ref(x3, weight)
    assert out3.dtype == ref3.dtype == jnp.float32
    assert jnp.allclose(out3, ref3, atol=1e-2, rtol=1e-2)

    # Larger row count to exercise a multi-step grid (still small overall).
    x4 = jax.random.normal(key, (64, 32, hidden), dtype=jnp.float32)
    out4 = rmsnorm(x4, weight)
    jax.block_until_ready(out4)
    assert jnp.allclose(out4, rmsnorm_ref(x4, weight), atol=1e-5, rtol=1e-5)

    print("KERNEL_OK")
</pallas_src>

<mosaic_0001>
module attributes {stable_mosaic.version = 11 : i64} {
  func.func @_rmsnorm_kernel(%arg0: i32, %arg1: memref<16x128xf32, #tpu.memory_space<vmem>>, %arg2: memref<1x128xf32, #tpu.memory_space<vmem>>, %arg3: memref<16x128xf32, #tpu.memory_space<vmem>>) attributes {dimension_semantics = [#tpu.dimension_semantics<parallel>], iteration_bounds = array<i64: 1>, scalar_prefetch = 0 : i64, scratch_operands = 0 : i64, tpu.core_type = #tpu.core_type<tc>, window_params = [{transform_indices = @transform_0, window_bounds = array<i64: 16, 128>}, {pipeline_mode = #tpu.pipeline_mode<synchronous>, transform_indices = @transform_1, window_bounds = array<i64: 1, 128>}, {transform_indices = @transform_2, window_bounds = array<i64: 16, 128>}]} {
    %c0 = arith.constant 0 : index
    %c0_0 = arith.constant 0 : index
    %0 = vector.load %arg1[%c0, %c0_0] : memref<16x128xf32, #tpu.memory_space<vmem>>, vector<16x128xf32>
    %1 = arith.mulf %0, %0 : vector<16x128xf32>
    %cst = arith.constant dense<0.000000e+00> : vector<16xf32>
    %2 = vector.multi_reduction <add>, %1, %cst [1] : vector<16x128xf32> to vector<16xf32>
    %3 = vector.shape_cast %2 : vector<16xf32> to vector<16x1xf32>
    %cst_1 = arith.constant 1.280000e+02 : f32
    %4 = vector.broadcast %cst_1 : f32 to vector<16x1xf32>
    %5 = arith.divf %3, %4 : vector<16x1xf32>
    %cst_2 = arith.constant 9.99999997E-7 : f32
    %6 = vector.broadcast %cst_2 : f32 to vector<16x1xf32>
    %7 = arith.addf %5, %6 : vector<16x1xf32>
    %8 = math.rsqrt %7 : vector<16x1xf32>
    %9 = vector.broadcast %8 : vector<16x1xf32> to vector<16x128xf32>
    %10 = arith.mulf %0, %9 : vector<16x128xf32>
    %c0_3 = arith.constant 0 : index
    %c0_4 = arith.constant 0 : index
    %11 = vector.load %arg2[%c0_3, %c0_4] : memref<1x128xf32, #tpu.memory_space<vmem>>, vector<1x128xf32>
    %12 = vector.broadcast %11 : vector<1x128xf32> to vector<16x128xf32>
    %13 = arith.mulf %12, %10 : vector<16x128xf32>
    %c0_5 = arith.constant 0 : index
    %c0_6 = arith.constant 0 : index
    %14 = vector.load %arg3[%c0_5, %c0_6] : memref<16x128xf32, #tpu.memory_space<vmem>>, vector<16x128xf32>
    tpu.vector_store %arg3[%c0_5, %c0_6], %13 {strides = array<i32>} : memref<16x128xf32, #tpu.memory_space<vmem>>, vector<16x128xf32>,
    return
  }
  func.func @transform_0(%arg0: i32) -> (i32, i32) {
    %c0_i32 = arith.constant 0 : i32
    %c0_i32_0 = arith.constant 0 : i32
    return %arg0, %c0_i32 : i32, i32
  }
  func.func @transform_1(%arg0: i32) -> (i32, i32) {
    %c0_i32 = arith.constant 0 : i32
    %c0_i32_0 = arith.constant 0 : i32
    %c0_i32_1 = arith.constant 0 : i32
    return %c0_i32, %c0_i32_0 : i32, i32
  }
  func.func @transform_2(%arg0: i32) -> (i32, i32) {
    %c0_i32 = arith.constant 0 : i32
    %c0_i32_0 = arith.constant 0 : i32
    return %arg0, %c0_i32 : i32, i32
  }
}

</mosaic_0001>

<llo_original>
// kernel: tpu_custom_call.1
$region0: #{tpu_custom_call.1}
  #allocation0 [shape = 'u32[]', space=smem, size = 0x4, offset = 0x4, fixed_abs, tag = 'smem constant byte address 0x4 - core index']
  #allocation1 [shape = 'u32[144,128]{1,0:T(1,128)}', space=vmem, size = 0x12000, scoped, tag = 'internal scratch']
  %s0 = inlined_call_operand.hbm [shape: f32[16,128], index: 0, kind: input, shape index: {}]
  %s1 = inlined_call_operand.vmem [shape: f32[1,128], index: 1, kind: input, shape index: {}]
  %s2 = inlined_call_operand.hbm [shape: f32[16,128], index: 2, kind: output, shape index: {}]
  %s3 = sld [smem:[#allocation0]]
  $region22: #{tpu_custom_call.1} parent=0
    _
  %s5 = ssub.s32 1, %s3
  %s6 = scalar_select 0, %s5, %s3
  $region1: #{tpu_custom_call.1} parent=0
    #allocation2 [shape = 'u8[8192]{0}', space=vmem, size = 0x2000, scoped, tag = 'input window, operand 0, single buffered']
    #allocation3 [shape = 's32[1]{0}', space=sflag, size = 0x4, scoped, tag = 'scoped memory for tpu_custom_call.1']
    #allocation4 [shape = 's32[1]{0}', space=sflag, size = 0x4, scoped, tag = 'scoped memory for tpu_custom_call.1']
    #allocation5 [shape = 'u8[8192]{0}', space=vmem, size = 0x2000, scoped, tag = 'output window, operand 0, single buffered']
    %7 = vsyncpa [#allocation3], 0
    %8 = vsyncpa [#allocation4], 0
    // Predicated region
    $region2: #{tpu_custom_call.1} parent=1 // pred_check
      _
    $region3: #{tpu_custom_call.1} parent=1 // pred_check_branch
      %10 = sbr.rel (0) target = $region5
    $region4: #{tpu_custom_call.1} parent=1 // pred_region
      %s12 = ssub.s32 256, 256
      %13 = vsyncadd [#allocation3], %s12
      %s14 = sshll.u32 [#allocation2], 4
      %s15 = int_to_ptr.vmem [resolvable:$true] %s14
      %20 = dma.hbm_to_vmem [thread:$0]  %s0, 256, %s15, [#allocation3], 128, 128, 8
    $region5: #{tpu_custom_call.1} parent=1 // pred_fallthru
      _
    // Predicated region
    $region6: #{tpu_custom_call.1} parent=1 // pred_check
      _
    $region7: #{tpu_custom_call.1} parent=1 // pred_check_branch
      %22 = sbr.rel (0) target = $region9
    $region8: #{tpu_custom_call.1} parent=1 // pred_region
      _
    $region9: #{tpu_custom_call.1} parent=1 // pred_fallthru
      _
    // Predicated region
    $region10: #{tpu_custom_call.1} parent=1 // pred_check
      _
    $region11: #{tpu_custom_call.1} parent=1 // pred_check_branch
      %24 = sbr.rel (0) target = $region13
    $region12: #{tpu_custom_call.1} parent=1 // pred_region
      %25 = dma.done [#allocation3], 256
    $region13: #{tpu_custom_call.1} parent=1 // pred_fallthru
      _
    %v26 = vld [vmem:[#allocation2] sm:$0xff]
    %v27 = vld [vmem:[#allocation2 + $0x8] sm:$0xff]
    %v28 = vmul.f32 %v26, %v26
    %v29 = vmul.f32 %v27, %v27
    %30 = vadd.xlane.f32.xlu0 %v28
    %v31 = vpop.xlane.xlu0 %30
    %32 = vadd.xlane.f32.xlu0 %v29
    %v33 = vpop.xlane.xlu0 %32
    %v34 = vrcp.pop 128.0
    %v35 = vmul.f32 %v31, %v34
    %v36 = vmul.f32 %v33, %v34
    %v37 = vadd.f32 %v35, 1e-06
    %v38 = vadd.f32 %v36, 1e-06
    %v39 = vrsqrt.pop %v37
    %v40 = vrsqrt.pop %v38
    %v41 = vmul.f32 %v26, %v39
    %v42 = vmul.f32 %v27, %v40
    %v43 = vld [vmem:[%s1] sm:$0x1]
    %v45 = vlaneseq
    %v46 = vshrl.u32 %v45, 7
    %v47 = vsub.s32 0, %v46
    %v48 = vrot.slane %v43, %v47
    %v50 = vmul.f32 %v48, %v41
    %v51 = vmul.f32 %v48, %v42
    %52 = vst [vmem:[#allocation5] sm:$0xff] %v50
    %53 = vst [vmem:[#allocation5 + $0x8] sm:$0xff] %v51
    // Predicated region
    $region14: #{tpu_custom_call.1} parent=1 // pred_check
      _
    $region15: #{tpu_custom_call.1} parent=1 // pred_check_branch
      %55 = sbr.rel (0) target = $region17
    $region16: #{tpu_custom_call.1} parent=1 // pred_region
      %s57 = ssub.s32 256, 256
      %58 = vsyncadd [#allocation4], %s57
      %s59 = sshll.u32 [#allocation5], 4
      %s60 = int_to_ptr.vmem [resolvable:$true] %s59
      %65 = dma.vmem_to_hbm [thread:$0]  %s60, 256, %s2, [#allocation4], 128, 128, 8
    $region17: #{tpu_custom_call.1} parent=1 // pred_fallthru
      _
    // Predicated region
    $region18: #{tpu_custom_call.1} parent=1 // pred_check
      _
    $region19: #{tpu_custom_call.1} parent=1 // pred_check_branch
      %67 = sbr.rel (0) target = $region21
    $region20: #{tpu_custom_call.1} parent=1 // pred_region
      %68 = dma.done [#allocation4], 256
    $region21: #{tpu_custom_call.1} parent=1 // pred_fallthru
      _
    %69 = vsyncpa [#allocation3], 1
    %70 = vsyncpa [#allocation4], 1

</llo_original>
